<compile_context>
chip_gen: v6e
topology: v6e:2x2x1
jax: 0.10.0
libtpu: 0.0.40
codegen_flags: <defaults>
</compile_context>

<pallas_src>
import functools
import math

import jax
import jax.numpy as jnp
from jax.experimental import pallas as pl
from jax.experimental.pallas import tpu as pltpu


def _round_up(v, m):
    return ((v + m - 1) // m) * m


def _vmem_budget_bytes():
    """~75% of physical VMEM per core (48 MiB fallback, safe on v7x)."""
    cap = 64 * 1024 * 1024
    try:
        info = pltpu.get_tpu_info()
        cap = int(getattr(info, "vmem_capacity_bytes", cap))
    except Exception:
        pass
    return int(cap * 3 // 4)


# ----------------------------- Pallas kernel -------------------------------


def _kan_kernel(x_ref, grid_ref, recip_ref, w_ref, o_ref, act_ref, *,
                spline_order, in_features, n_bases):
    """One (row-tile, out-tile) grid step.

    x_ref:     (TN, IN)        input rows
    grid_ref:  (1,  L)         lane-packed knots, lane t*IN+f = grid[f, t]
    recip_ref: (2K, L)         rows [0,K): 1/(g_{t+k}-g_t); [K,2K): -1/(g_{t+k+1}-g_{t+1})
    w_ref:     (K_pad, TO)     packed [spline ; base ; 0-pad] weight slice
    o_ref:     (TN, TO)        output rows (lane-dense padded)
    act_ref:   (TN, K_pad)     VMEM scratch: packed activation slab
    """
    j = pl.program_id(1)
    L = grid_ref.shape[1]                       # m * IN
    n_knots = L // in_features                  # m
    c_in = n_bases * in_features                # C * IN
    k_real = c_in + in_features                 # (C + 1) * IN
    k_pad = act_ref.shape[1]

    # Build the activation slab only when the row tile changes (out axis is
    # the inner, sequential grid axis; with one out tile this is always true).
    @pl.when(j == 0)
    def _build_activation():
        x = x_ref[...].astype(jnp.float32)                  # (TN, IN)
        tn = x.shape[0]

        # Base path: SiLU(x); sigmoid lands on the EUP slot.
        silu = x * jax.nn.sigmoid(x)

        # Lane-packed slab: lane p = t*IN + f  <->  knot index t, feature f.
        x_slab = jnp.concatenate([x] * n_knots, axis=-1)    # (TN, L)
        xd = x_slab - grid_ref[...]                          # x - g_t, all knots

        # Degree-0 bases: 1[g_t <= x < g_{t+1}]; neighbour t+1 via XLU roll.
        xd_next = pltpu.roll(xd, L - in_features, axis=1)    # lane p -> xd[p+IN]
        b = jnp.where((xd >= 0.0) & (xd_next < 0.0), 1.0, 0.0)

        # Cox-de Boor recursion, in place on the lane-dense slab, with
        # precomputed (safe-divided) knot-difference reciprocals -> no divides.
        for k in range(1, spline_order + 1):
            r_a = recip_ref[k - 1:k, :]                          # (1, L)
            r_b = recip_ref[spline_order + k - 1:spline_order + k, :]
            xd_k = pltpu.roll(xd, L - (k + 1) * in_features, axis=1)  # xd[p+(k+1)IN]
            b_next = pltpu.roll(b, L - in_features, axis=1)           # b[p+IN]
            # r_b already carries the minus sign of (g_{t+k+1} - x).
            b = xd * r_a * b + xd_k * r_b * b_next
        # valid bases now occupy lanes [0, C*IN)

        dt = act_ref.dtype
        act_ref[:, :c_in] = b[:, :c_in].astype(dt)           # aligned big block
        act_ref[:, c_in:k_real] = silu.astype(dt)             # small masked store
        if k_pad > k_real:                                     # zero the pad lanes
            act_ref[:, k_real:] = jnp.zeros((tn, k_pad - k_real), dt)

    # Single fused MXU matmul (bf16 x bf16 by default) with f32 accumulation.
    o_ref[...] = jnp.dot(
        act_ref[...], w_ref[...], preferred_element_type=jnp.float32
    ).astype(o_ref.dtype)


# --------------------------- parameter packing ------------------------------


def pack_kan_params(grid, base_weight, spline_weight, spline_scaler, *,
                    spline_order, compute_dtype=jnp.bfloat16):
    """One-time packing of KANLinear parameters (hoisted out of the forward)."""
    out_features, in_features = base_weight.shape
    n_bases = spline_weight.shape[-1]            # C = grid_size + spline_order
    n_knots = grid.shape[1]                      # m = grid_size + 2*order + 1
    L = n_knots * in_features

    # fused weight rows: [spline (C*IN) ; base (IN) ; zero pad]
    scaled = (spline_weight * spline_scaler[:, :, None]).astype(jnp.float32)
    w_spline = jnp.transpose(scaled, (2, 1, 0)).reshape(
        n_bases * in_features, out_features)                 # row = c*IN + i
    w = jnp.concatenate([w_spline, base_weight.T.astype(jnp.float32)], axis=0)

    k_real = (n_bases + 1) * in_features
    k_pad = _round_up(k_real, 128)               # 128-aligned MXU contraction
    # Lane-dense output; pad to 256 for larger layers so >=256-wide out tiles
    # exist if out-tiling is ever needed (MXU is 256-wide on v6e/v7x).
    o_pad = (_round_up(out_features, 128) if out_features <= 128
             else _round_up(out_features, 256))
    w = jnp.pad(w, ((0, k_pad - k_real), (0, o_pad - out_features)))
    w = w.astype(compute_dtype)

    # Lane-packed knots: lane t*IN + f = grid[f, t].
    grid_t = grid.T.astype(jnp.float32)                       # (m, IN)
    grid_flat = grid_t.reshape(1, L)

    def _safe_recip(d):
        nz = d != 0
        return jnp.where(nz, 1.0 / jnp.where(nz, d, 1.0), 0.0)

    # Knot-difference reciprocals per recursion level, lane-packed like grid.
    rows = []
    for k in range(1, spline_order + 1):
        ra = _safe_recip(grid_t[k:, :] - grid_t[:-k, :])              # (m-k, IN)
        rows.append(jnp.pad(ra, ((0, k), (0, 0))).reshape(L))
    for k in range(1, spline_order + 1):
        rb = -_safe_recip(grid_t[k + 1:, :] - grid_t[1:-k, :])        # (m-k-1, IN)
        rows.append(jnp.pad(rb, ((0, k + 1), (0, 0))).reshape(L))
    recip_flat = jnp.stack(rows, axis=0).astype(jnp.float32)          # (2K, L)

    return {
        "w_packed": w,
        "grid_flat": grid_flat,
        "recip_flat": recip_flat,
        "in_features": in_features,
        "out_features": out_features,
        "spline_order": spline_order,
        "n_bases": n_bases,
        "act_dtype": jnp.dtype(compute_dtype),
    }


# ------------------------------- forward ------------------------------------


def kan_linear_forward(x, params, *, tile_n=256):
    """Forward of KANLinear.  x: (..., in_features) -> (..., out_features)."""
    in_features = params["in_features"]
    out_features = params["out_features"]
    spline_order = params["spline_order"]
    n_bases = params["n_bases"]
    w = params["w_packed"]
    grid_flat = params["grid_flat"]
    recip = params["recip_flat"]
    act_dtype = params["act_dtype"]

    assert x.shape[-1] == in_features
    original_shape = x.shape
    x2d = x.reshape(-1, in_features)
    n_rows = x2d.shape[0]
    out_dtype = x.dtype

    k_pad, o_pad = w.shape
    L = grid_flat.shape[1]

    budget = _vmem_budget_bytes()
    x_bytes = x2d.dtype.itemsize
    w_bytes = w.dtype.itemsize
    out_bytes = jnp.dtype(out_dtype).itemsize
    act_bytes = act_dtype.itemsize

    def est_bytes(tn_, to_):
        # double-buffered blocks + resident scratch + slab-build temporaries
        return (2 * tn_ * in_features * x_bytes
                + 2 * L * 4
                + 2 * recip.shape[0] * L * 4
                + 2 * k_pad * to_ * w_bytes
                + 2 * tn_ * to_ * out_bytes
                + tn_ * k_pad * act_bytes
                + 6 * tn_ * L * 4)

    # Row tile: multiple of 16 (bf16-safe min tile), no forced multi-tile split.
    tn0 = max(16, min(_round_up(tile_n, 16), _round_up(n_rows, 16)))
    # Out tile: prefer the whole weight VMEM-resident (constant index map =>
    # DMA'd once); only out-tile as a fallback when it does not fit.
    to_cands = [o_pad] + [d for d in (512, 256, 128)
                          if d < o_pad and o_pad % d == 0]

    tn, to = 16, to_cands[-1]
    found = False
    for cand in to_cands:
        t = tn0
        while True:
            if est_bytes(t, cand) <= budget:
                tn, to, found = t, cand, True
                break
            if t <= 16:
                break
            t = max(16, ((t // 2) + 15) // 16 * 16)
        if found:
            break
    # TODO(synk): for very large K_pad (>~8K) add a K reduction grid axis with
    # an f32 accumulator instead of one monolithic contraction.

    n_pad_rows = (-n_rows) % tn
    if n_pad_rows:
        x2d = jnp.pad(x2d, ((0, n_pad_rows), (0, 0)))
    n_total = n_rows + n_pad_rows
    n_row_tiles = n_total // tn
    n_out_tiles = o_pad // to

    vmem_limit = int(min(budget, 2 * est_bytes(tn, to) + (16 << 20)))

    kernel = functools.partial(_kan_kernel, spline_order=spline_order,
                               in_features=in_features, n_bases=n_bases)

    out = pl.pallas_call(
        kernel,
        out_shape=jax.ShapeDtypeStruct((n_total, o_pad), out_dtype),
        grid_spec=pltpu.PrefetchScalarGridSpec(
            num_scalar_prefetch=0,
            grid=(n_row_tiles, n_out_tiles),
            in_specs=[
                pl.BlockSpec((tn, in_features), lambda i, j: (i, 0)),
                pl.BlockSpec((1, L), lambda i, j: (0, 0)),
                pl.BlockSpec((recip.shape[0], L), lambda i, j: (0, 0)),
                pl.BlockSpec((k_pad, to), lambda i, j: (0, j)),
            ],
            out_specs=pl.BlockSpec((tn, to), lambda i, j: (i, j)),
            scratch_shapes=[pltpu.VMEM((tn, k_pad), act_dtype)],
        ),
        compiler_params=pltpu.CompilerParams(
            dimension_semantics=("parallel", "arbitrary"),
            vmem_limit_bytes=vmem_limit,
        ),
    )(x2d, grid_flat, recip, w)

    if n_total != n_rows or o_pad != out_features:
        out = out[:n_rows, :out_features]
    return out.reshape(*original_shape[:-1], out_features)


# ------------------------ pure-JAX reference (check) -------------------------


def kan_linear_reference(x, grid, base_weight, spline_weight, spline_scaler,
                         *, spline_order):
    in_features = base_weight.shape[1]
    out_features = base_weight.shape[0]
    original_shape = x.shape
    x2d = x.reshape(-1, in_features).astype(jnp.float32)

    silu = x2d * jax.nn.sigmoid(x2d)
    base = silu @ base_weight.T

    xg = x2d[:, :, None]
    b = ((xg >= grid[:, :-1]) & (xg < grid[:, 1:])).astype(jnp.float32)
    for k in range(1, spline_order + 1):
        b = ((xg - grid[:, :-(k + 1)]) / (grid[:, k:-1] - grid[:, :-(k + 1)])
             * b[:, :, :-1]
             + (grid[:, k + 1:] - xg) / (grid[:, k + 1:] - grid[:, 1:-k])
             * b[:, :, 1:])

    scaled = spline_weight * spline_scaler[:, :, None]
    spline = b.reshape(b.shape[0], -1) @ scaled.reshape(out_features, -1).T
    out = base + spline
    return out.reshape(*original_shape[:-1], out_features)


# --------------------------------- main --------------------------------------


if __name__ == "__main__":
    # module config
    in_features = 32
    out_features = 32
    grid_size = 5
    spline_order = 3
    scale_base = 1.0
    scale_spline = 1.0
    grid_range = (-1.0, 1.0)

    # grid buffer: (in_features, grid_size + 2*spline_order + 1)
    h = (grid_range[1] - grid_range[0]) / grid_size
    knots = (jnp.arange(-spline_order, grid_size + spline_order + 1,
                        dtype=jnp.float32) * h + grid_range[0])
    grid = jnp.broadcast_to(knots, (in_features, knots.shape[0]))

    # deterministic parameter init (kaiming-uniform-style bounds; synthetic,
    # not a checkpoint load).
    # TODO(synk): torch.linalg.lstsq-based curve2coeff init not reproduced.
    key = jax.random.PRNGKey(0)
    k1, k2, k3, kx = jax.random.split(key, 4)

    a_base = math.sqrt(5.0) * scale_base
    bound_base = math.sqrt(2.0 / (1.0 + a_base ** 2)) * math.sqrt(3.0 / in_features)
    base_weight = jax.random.uniform(
        k1, (out_features, in_features), jnp.float32,
        minval=-bound_base, maxval=bound_base)

    n_coeff = grid_size + spline_order
    spline_weight = jax.random.uniform(
        k2, (out_features, in_features, n_coeff), jnp.float32,
        minval=-0.05, maxval=0.05)

    a_spl = math.sqrt(5.0) * scale_spline
    bound_spl = math.sqrt(2.0 / (1.0 + a_spl ** 2)) * math.sqrt(3.0 / in_features)
    spline_scaler = jax.random.uniform(
        k3, (out_features, in_features), jnp.float32,
        minval=-bound_spl, maxval=bound_spl)

    # example input: (batch=2, seq=8, in_features=32)
    x = jax.random.uniform(kx, (2, 8, in_features), jnp.float32,
                           minval=-1.0, maxval=1.0)

    ref = kan_linear_reference(x, grid, base_weight, spline_weight,
                               spline_scaler, spline_order=spline_order)

    # default bf16 path (bf16 weight + bf16 activation slab, f32 accumulation)
    params_bf16 = pack_kan_params(grid, base_weight, spline_weight,
                                  spline_scaler, spline_order=spline_order,
                                  compute_dtype=jnp.bfloat16)
    out_bf16 = jax.block_until_ready(kan_linear_forward(x, params_bf16))
    assert out_bf16.shape == (2, 8, out_features)
    assert jnp.allclose(out_bf16, ref, atol=5e-2, rtol=5e-2), "bf16 mismatch"

    # full-precision packing: tight check of the kernel math
    params_f32 = pack_kan_params(grid, base_weight, spline_weight,
                                 spline_scaler, spline_order=spline_order,
                                 compute_dtype=jnp.float32)
    out_f32 = jax.block_until_ready(kan_linear_forward(x, params_f32))
    assert out_f32.shape == (2, 8, out_features)
    assert jnp.allclose(out_f32, ref, atol=1e-4, rtol=1e-4), "f32 mismatch"

    print("KERNEL_OK")
</pallas_src>

<mosaic_0001>
module attributes {stable_mosaic.version = 11 : i64} {
  func.func @_kan_kernel(%arg0: i32, %arg1: i32, %arg2: memref<16x32xf32, #tpu.memory_space<vmem>>, %arg3: memref<1x384xf32, #tpu.memory_space<vmem>>, %arg4: memref<6x384xf32, #tpu.memory_space<vmem>>, %arg5: memref<384x128xbf16, #tpu.memory_space<vmem>>, %arg6: memref<16x128xf32, #tpu.memory_space<vmem>>, %arg7: memref<16x384xbf16, #tpu.memory_space<vmem>>) attributes {dimension_semantics = [#tpu.dimension_semantics<parallel>, #tpu.dimension_semantics<arbitrary>], iteration_bounds = array<i64: 1, 1>, scalar_prefetch = 0 : i64, scratch_operands = 1 : i64, tpu.core_type = #tpu.core_type<tc>, window_params = [{transform_indices = @transform_0, window_bounds = array<i64: 16, 32>}, {pipeline_mode = #tpu.pipeline_mode<synchronous>, transform_indices = @transform_1, window_bounds = array<i64: 1, 384>}, {pipeline_mode = #tpu.pipeline_mode<synchronous>, transform_indices = @transform_2, window_bounds = array<i64: 6, 384>}, {transform_indices = @transform_3, window_bounds = array<i64: 384, 128>}, {transform_indices = @transform_4, window_bounds = array<i64: 16, 128>}]} {
    %c0_i32 = arith.constant 0 : i32
    %0 = arith.cmpi eq, %arg1, %c0_i32 : i32
    %1 = arith.extui %0 : i1 to i32
    %c0_i32_0 = arith.constant 0 : i32
    %2 = arith.cmpi ne, %1, %c0_i32_0 : i32
    scf.if %2 {
      %c0_6 = arith.constant 0 : index
      %c0_7 = arith.constant 0 : index
      %7 = vector.load %arg2[%c0_6, %c0_7] : memref<16x32xf32, #tpu.memory_space<vmem>>, vector<16x32xf32>
      %8 = arith.negf %7 : vector<16x32xf32>
      %9 = math.exp %8 : vector<16x32xf32>
      %cst_8 = arith.constant 1.000000e+00 : f32
      %10 = vector.broadcast %cst_8 : f32 to vector<16x32xf32>
      %11 = arith.addf %10, %9 : vector<16x32xf32>
      %12 = arith.divf %10, %11 : vector<16x32xf32>
      %13 = arith.mulf %7, %12 : vector<16x32xf32>
      %14 = tpu.concatenate %7, %7, %7, %7, %7, %7, %7, %7, %7, %7, %7, %7 in 1 : vector<16x32xf32>, vector<16x32xf32>, vector<16x32xf32>, vector<16x32xf32>, vector<16x32xf32>, vector<16x32xf32>, vector<16x32xf32>, vector<16x32xf32>, vector<16x32xf32>, vector<16x32xf32>, vector<16x32xf32>, vector<16x32xf32> -> vector<16x384xf32>
      %c0_9 = arith.constant 0 : index
      %c0_10 = arith.constant 0 : index
      %15 = vector.load %arg3[%c0_9, %c0_10] : memref<1x384xf32, #tpu.memory_space<vmem>>, vector<1x384xf32>
      %16 = vector.broadcast %15 : vector<1x384xf32> to vector<16x384xf32>
      %17 = arith.subf %14, %16 : vector<16x384xf32>
      %c352_i32 = arith.constant 352 : i32
      %18 = tpu.dynamic_rotate %17 by %c352_i32 dim 1 : vector<16x384xf32>, i32 -> vector<16x384xf32>
      %cst_11 = arith.constant 0.000000e+00 : f32
      %19 = vector.broadcast %cst_11 : f32 to vector<16x384xf32>
      %20 = arith.cmpf oge, %17, %19 : vector<16x384xf32>
      %cst_12 = arith.constant 0.000000e+00 : f32
      %21 = vector.broadcast %cst_12 : f32 to vector<16x384xf32>
      %22 = arith.cmpf olt, %18, %21 : vector<16x384xf32>
      %23 = arith.andi %20, %22 : vector<16x384xi1>
      %cst_13 = arith.constant 1.000000e+00 : f32
      %cst_14 = arith.constant 0.000000e+00 : f32
      %24 = vector.broadcast %cst_13 : f32 to vector<16x384xf32>
      %25 = vector.broadcast %cst_14 : f32 to vector<16x384xf32>
      %26 = arith.select %23, %24, %25 : vector<16x384xi1>, vector<16x384xf32>
      %c0_15 = arith.constant 0 : index
      %c0_16 = arith.constant 0 : index
      %27 = vector.load %arg4[%c0_15, %c0_16] : memref<6x384xf32, #tpu.memory_space<vmem>>, vector<1x384xf32>
      %c3 = arith.constant 3 : index
      %c0_17 = arith.constant 0 : index
      %28 = vector.load %arg4[%c3, %c0_17] : memref<6x384xf32, #tpu.memory_space<vmem>>, vector<1x384xf32>
      %c320_i32 = arith.constant 320 : i32
      %29 = tpu.dynamic_rotate %17 by %c320_i32 dim 1 : vector<16x384xf32>, i32 -> vector<16x384xf32>
      %c352_i32_18 = arith.constant 352 : i32
      %30 = tpu.dynamic_rotate %26 by %c352_i32_18 dim 1 : vector<16x384xf32>, i32 -> vector<16x384xf32>
      %31 = vector.broadcast %27 : vector<1x384xf32> to vector<16x384xf32>
      %32 = arith.mulf %17, %31 : vector<16x384xf32>
      %33 = arith.mulf %32, %26 : vector<16x384xf32>
      %34 = vector.broadcast %28 : vector<1x384xf32> to vector<16x384xf32>
      %35 = arith.mulf %29, %34 : vector<16x384xf32>
      %36 = arith.mulf %35, %30 : vector<16x384xf32>
      %37 = arith.addf %33, %36 : vector<16x384xf32>
      %c1 = arith.constant 1 : index
      %c0_19 = arith.constant 0 : index
      %38 = vector.load %arg4[%c1, %c0_19] : memref<6x384xf32, #tpu.memory_space<vmem>>, vector<1x384xf32>
      %c4 = arith.constant 4 : index
      %c0_20 = arith.constant 0 : index
      %39 = vector.load %arg4[%c4, %c0_20] : memref<6x384xf32, #tpu.memory_space<vmem>>, vector<1x384xf32>
      %c288_i32 = arith.constant 288 : i32
      %40 = tpu.dynamic_rotate %17 by %c288_i32 dim 1 : vector<16x384xf32>, i32 -> vector<16x384xf32>
      %c352_i32_21 = arith.constant 352 : i32
      %41 = tpu.dynamic_rotate %37 by %c352_i32_21 dim 1 : vector<16x384xf32>, i32 -> vector<16x384xf32>
      %42 = vector.broadcast %38 : vector<1x384xf32> to vector<16x384xf32>
      %43 = arith.mulf %17, %42 : vector<16x384xf32>
      %44 = arith.mulf %43, %37 : vector<16x384xf32>
      %45 = vector.broadcast %39 : vector<1x384xf32> to vector<16x384xf32>
      %46 = arith.mulf %40, %45 : vector<16x384xf32>
      %47 = arith.mulf %46, %41 : vector<16x384xf32>
      %48 = arith.addf %44, %47 : vector<16x384xf32>
      %c2 = arith.constant 2 : index
      %c0_22 = arith.constant 0 : index
      %49 = vector.load %arg4[%c2, %c0_22] : memref<6x384xf32, #tpu.memory_space<vmem>>, vector<1x384xf32>
      %c5 = arith.constant 5 : index
      %c0_23 = arith.constant 0 : index
      %50 = vector.load %arg4[%c5, %c0_23] : memref<6x384xf32, #tpu.memory_space<vmem>>, vector<1x384xf32>
      %c256_i32 = arith.constant 256 : i32
      %51 = tpu.dynamic_rotate %17 by %c256_i32 dim 1 : vector<16x384xf32>, i32 -> vector<16x384xf32>
      %c352_i32_24 = arith.constant 352 : i32
      %52 = tpu.dynamic_rotate %48 by %c352_i32_24 dim 1 : vector<16x384xf32>, i32 -> vector<16x384xf32>
      %53 = vector.broadcast %49 : vector<1x384xf32> to vector<16x384xf32>
      %54 = arith.mulf %17, %53 : vector<16x384xf32>
      %55 = arith.mulf %54, %48 : vector<16x384xf32>
      %56 = vector.broadcast %50 : vector<1x384xf32> to vector<16x384xf32>
      %57 = arith.mulf %51, %56 : vector<16x384xf32>
      %58 = arith.mulf %57, %52 : vector<16x384xf32>
      %59 = arith.addf %55, %58 : vector<16x384xf32>
      %60 = vector.extract_strided_slice %59 {offsets = [0, 0], sizes = [16, 256], strides = [1, 1]} : vector<16x384xf32> to vector<16x256xf32>
      %61 = arith.truncf %60 : vector<16x256xf32> to vector<16x256xbf16>
      %c0_25 = arith.constant 0 : index
      %c0_26 = arith.constant 0 : index
      %62 = vector.load %arg7[%c0_25, %c0_26] : memref<16x384xbf16, #tpu.memory_space<vmem>>, vector<16x256xbf16>
      tpu.vector_store %arg7[%c0_25, %c0_26], %61 {strides = array<i32>} : memref<16x384xbf16, #tpu.memory_space<vmem>>, vector<16x256xbf16>,
      %63 = arith.truncf %13 : vector<16x32xf32> to vector<16x32xbf16>
      %c0_27 = arith.constant 0 : index
      %c256 = arith.constant 256 : index
      %64 = vector.load %arg7[%c0_27, %c256] : memref<16x384xbf16, #tpu.memory_space<vmem>>, vector<16x32xbf16>
      tpu.vector_store %arg7[%c0_27, %c256], %63 {strides = array<i32>} : memref<16x384xbf16, #tpu.memory_space<vmem>>, vector<16x32xbf16>,
      %cst_28 = arith.constant 0.000000e+00 : bf16
      %65 = vector.broadcast %cst_28 : bf16 to vector<16x96xbf16>
      %c0_29 = arith.constant 0 : index
      %c288 = arith.constant 288 : index
      %66 = vector.load %arg7[%c0_29, %c288] : memref<16x384xbf16, #tpu.memory_space<vmem>>, vector<16x96xbf16>
      tpu.vector_store %arg7[%c0_29, %c288], %65 {strides = array<i32>} : memref<16x384xbf16, #tpu.memory_space<vmem>>, vector<16x96xbf16>,
    } else {
    }
    %c0 = arith.constant 0 : index
    %c0_1 = arith.constant 0 : index
    %3 = vector.load %arg7[%c0, %c0_1] : memref<16x384xbf16, #tpu.memory_space<vmem>>, vector<16x384xbf16>
    %c0_2 = arith.constant 0 : index
    %c0_3 = arith.constant 0 : index
    %4 = vector.load %arg5[%c0_2, %c0_3] : memref<384x128xbf16, #tpu.memory_space<vmem>>, vector<384x128xbf16>
    %cst = arith.constant dense<0.000000e+00> : vector<16x128xf32>
    %5 = tpu.matmul %3, %4, %cst {dimension_numbers = #tpu.dot_dimension_numbers<[1], [0], [0], [1], [0, 0, 1, 1], [], []>} : vector<16x384xbf16>, vector<384x128xbf16>, vector<16x128xf32> -> vector<16x128xf32>
    %c0_4 = arith.constant 0 : index
    %c0_5 = arith.constant 0 : index
    %6 = vector.load %arg6[%c0_4, %c0_5] : memref<16x128xf32, #tpu.memory_space<vmem>>, vector<16x128xf32>
    tpu.vector_store %arg6[%c0_4, %c0_5], %5 {strides = array<i32>} : memref<16x128xf32, #tpu.memory_space<vmem>>, vector<16x128xf32>,
    return
  }
  func.func @transform_0(%arg0: i32, %arg1: i32) -> (i32, i32) {
    %c0_i32 = arith.constant 0 : i32
    %c0_i32_0 = arith.constant 0 : i32
    return %arg0, %c0_i32 : i32, i32
  }
  func.func @transform_1(%arg0: i32, %arg1: i32) -> (i32, i32) {
    %c0_i32 = arith.constant 0 : i32
    %c0_i32_0 = arith.constant 0 : i32
    %c0_i32_1 = arith.constant 0 : i32
    return %c0_i32, %c0_i32_0 : i32, i32
  }
  func.func @transform_2(%arg0: i32, %arg1: i32) -> (i32, i32) {
    %c0_i32 = arith.constant 0 : i32
    %c0_i32_0 = arith.constant 0 : i32
    %c0_i32_1 = arith.constant 0 : i32
    return %c0_i32, %c0_i32_0 : i32, i32
  }
  func.func @transform_3(%arg0: i32, %arg1: i32) -> (i32, i32) {
    %c0_i32 = arith.constant 0 : i32
    %c0_i32_0 = arith.constant 0 : i32
    return %c0_i32, %arg1 : i32, i32
  }
  func.func @transform_4(%arg0: i32, %arg1: i32) -> (i32, i32) {
    %c0_i32 = arith.constant 0 : i32
    return %arg0, %arg1 : i32, i32
  }
}

</mosaic_0001>

<llo_original>
// kernel: tpu_custom_call.1
$region0: #{tpu_custom_call.1}
  #allocation0 [shape = 'u32[]', space=smem, size = 0x4, offset = 0x4, fixed_abs, tag = 'smem constant byte address 0x4 - core index']
  #allocation1 [shape = 'u32[144,128]{1,0:T(1,128)}', space=vmem, size = 0x12000, scoped, tag = 'internal scratch']
  #allocation2 [shape = 'bf16[16,384]{1,0:T(8,128)(2,1)}', space=vmem, size = 0x3000, scoped, tag = 'scratch operand']
  %s0 = inlined_call_operand.hbm [shape: f32[16,32], index: 0, kind: input, shape index: {}]
  %s1 = inlined_call_operand.hbm [shape: f32[1,384], index: 1, kind: input, shape index: {}]
  %s2 = inlined_call_operand.hbm [shape: f32[6,384], index: 2, kind: input, shape index: {}]
  %s3 = inlined_call_operand.hbm [shape: bf16[384,128], index: 3, kind: input, shape index: {}]
  %s4 = inlined_call_operand.hbm [shape: f32[16,128], index: 4, kind: output, shape index: {}]
  %s5 = sld [smem:[#allocation0]]
  $region46: #{tpu_custom_call.1} parent=0
    _
  %s7 = ssub.s32 1, %s5
  %s8 = scalar_select 0, %s7, %s5
  $region1: #{tpu_custom_call.1} parent=0
    #allocation3 [shape = 'u8[8192]{0}', space=vmem, size = 0x2000, scoped, tag = 'input window, operand 0, single buffered']
    #allocation4 [shape = 's32[1]{0}', space=sflag, size = 0x4, scoped, tag = 'scoped memory for tpu_custom_call.1']
    #allocation5 [shape = 's32[1]{0}', space=sflag, size = 0x4, scoped, tag = 'scoped memory for tpu_custom_call.1']
    #allocation6 [shape = 'u8[1536]{0}', space=vmem, size = 0x800, scoped, tag = 'input window, operand 1, single buffered']
    #allocation7 [shape = 's32[1]{0}', space=sflag, size = 0x4, scoped, tag = 'scoped memory for tpu_custom_call.1']
    #allocation8 [shape = 'u8[12288]{0}', space=vmem, size = 0x3000, scoped, tag = 'input window, operand 2, single buffered']
    #allocation9 [shape = 'u8[98304]{0}', space=vmem, size = 0x18000, scoped, tag = 'input window, operand 3, single buffered']
    #allocation10 [shape = 's32[1]{0}', space=sflag, size = 0x4, scoped, tag = 'scoped memory for tpu_custom_call.1']
    #allocation11 [shape = 'u8[8192]{0}', space=vmem, size = 0x2000, scoped, tag = 'output window, operand 0, single buffered']
    %9 = vsyncpa [#allocation4], 0
    %10 = vsyncpa [#allocation7], 0
    %11 = vsyncpa [#allocation10], 0
    %12 = vsyncpa [#allocation5], 0
    // Predicated region
    $region2: #{tpu_custom_call.1} parent=1 // pred_check
      _
    $region3: #{tpu_custom_call.1} parent=1 // pred_check_branch
      %14 = sbr.rel (0) target = $region5
    $region4: #{tpu_custom_call.1} parent=1 // pred_region
      %s16 = ssub.s32 256, 256
      %17 = vsyncadd [#allocation4], %s16
      %s18 = sshll.u32 [#allocation3], 4
      %s19 = int_to_ptr.vmem [resolvable:$true] %s18
      %24 = dma.hbm_to_vmem [thread:$0]  %s0, 256, %s19, [#allocation4], 128, 128, 8
    $region5: #{tpu_custom_call.1} parent=1 // pred_fallthru
      _
    // Predicated region
    $region6: #{tpu_custom_call.1} parent=1 // pred_check
      _
    $region7: #{tpu_custom_call.1} parent=1 // pred_check_branch
      %26 = sbr.rel (0) target = $region9
    $region8: #{tpu_custom_call.1} parent=1 // pred_region
      %s28 = ssub.s32 48, 48
      %29 = vsyncadd [#allocation7], %s28
      %s31 = sshll.u32 [#allocation6], 4
      %s32 = int_to_ptr.vmem [resolvable:$true] %s31
      %34 = dma.hbm_to_vmem [thread:$0]  %s1, 48, %s32, [#allocation7]
    $region9: #{tpu_custom_call.1} parent=1 // pred_fallthru
      _
    // Predicated region
    $region10: #{tpu_custom_call.1} parent=1 // pred_check
      _
    $region11: #{tpu_custom_call.1} parent=1 // pred_check_branch
      %36 = sbr.rel (0) target = $region13
    $region12: #{tpu_custom_call.1} parent=1 // pred_region
      %s38 = ssub.s32 384, 384
      %39 = vsyncadd [#allocation7], %s38
      %s41 = sshll.u32 [#allocation8], 4
      %s42 = int_to_ptr.vmem [resolvable:$true] %s41
      %44 = dma.hbm_to_vmem [thread:$0]  %s2, 384, %s42, [#allocation7]
    $region13: #{tpu_custom_call.1} parent=1 // pred_fallthru
      _
    // Predicated region
    $region14: #{tpu_custom_call.1} parent=1 // pred_check
      _
    $region15: #{tpu_custom_call.1} parent=1 // pred_check_branch
      %46 = sbr.rel (0) target = $region17
    $region16: #{tpu_custom_call.1} parent=1 // pred_region
      %s48 = ssub.s32 3072, 3072
      %49 = vsyncadd [#allocation10], %s48
      %s50 = sshll.u32 [#allocation9], 4
      %s51 = int_to_ptr.vmem [resolvable:$true] %s50
      %56 = dma.hbm_to_vmem [thread:$0]  %s3, 3072, %s51, [#allocation10], 64, 64, 4
    $region17: #{tpu_custom_call.1} parent=1 // pred_fallthru
      _
    // Predicated region
    $region18: #{tpu_custom_call.1} parent=1 // pred_check
      _
    $region19: #{tpu_custom_call.1} parent=1 // pred_check_branch
      %58 = sbr.rel (0) target = $region21
    $region20: #{tpu_custom_call.1} parent=1 // pred_region
      %59 = dma.done [#allocation4], 256
    $region21: #{tpu_custom_call.1} parent=1 // pred_fallthru
      _
    // Predicated region
    $region22: #{tpu_custom_call.1} parent=1 // pred_check
      _
    $region23: #{tpu_custom_call.1} parent=1 // pred_check_branch
      %61 = sbr.rel (0) target = $region25
    $region24: #{tpu_custom_call.1} parent=1 // pred_region
      %62 = dma.done [#allocation7], 48
    $region25: #{tpu_custom_call.1} parent=1 // pred_fallthru
      _
    // Predicated region
    $region26: #{tpu_custom_call.1} parent=1 // pred_check
      _
    $region27: #{tpu_custom_call.1} parent=1 // pred_check_branch
      %64 = sbr.rel (0) target = $region29
    $region28: #{tpu_custom_call.1} parent=1 // pred_region
      %65 = dma.done [#allocation7], 384
    $region29: #{tpu_custom_call.1} parent=1 // pred_fallthru
      _
    // Predicated region
    $region30: #{tpu_custom_call.1} parent=1 // pred_check
      _
    $region31: #{tpu_custom_call.1} parent=1 // pred_check_branch
      %67 = sbr.rel (0) target = $region33
    $region32: #{tpu_custom_call.1} parent=1 // pred_region
      %68 = dma.done [#allocation10], 3072
    $region33: #{tpu_custom_call.1} parent=1 // pred_fallthru
      _
    %p70 = scmp.eq.s32.totalorder 0, 0
    // Predicated region
    $region34: #{tpu_custom_call.1} parent=1 // pred_check
      %p71 = pneg %p70
    $region35: #{tpu_custom_call.1} parent=1 // pred_check_branch
      %73 = sbr.rel (%p71) target = $region37
    $region36: #{tpu_custom_call.1} parent=1 // pred_region
      %v74 = vld [vmem:[#allocation3] sm:$0xff]
      %v75 = vld [vmem:[#allocation3 + $0x8] sm:$0xff]
      %v76 = vxor.u32 %v74, 2147483648
      %v77 = vxor.u32 %v75, 2147483648
      %v78 = vmul.f32 %v76, 1.442695
      %v79 = vpow.pop %v78
      %v80 = vmul.f32 %v77, 1.442695
      %v81 = vpow.pop %v80
      %v82 = vadd.f32 %v79, 1.0
      %v83 = vadd.f32 %v81, 1.0
      %v84 = vrcp.pop %v82
      %v85 = vmul.f32 1.0, %v84
      %v86 = vrcp.pop %v83
      %v87 = vmul.f32 1.0, %v86
      %v88 = vmul.f32 %v74, %v85
      %v89 = vmul.f32 %v75, %v87
      %92 = vrot.lane.b32.xlu0 %v74, 32
      %v93 = vpop.permute.xlu0 %92
      %94 = vrot.lane.b32.xlu0 %v75, 32
      %v95 = vpop.permute.xlu0 %94
      %98 = vrot.lane.b32.xlu0 %v74, 64
      %v99 = vpop.permute.xlu0 %98
      %100 = vrot.lane.b32.xlu0 %v75, 64
      %v101 = vpop.permute.xlu0 %100
      %104 = vrot.lane.b32.xlu0 %v74, 96
      %v105 = vpop.permute.xlu0 %104
      %106 = vrot.lane.b32.xlu0 %v75, 96
      %v107 = vpop.permute.xlu0 %106
      %vm110 = vcmask 261120
      %v111 = vsel %vm110, %v74, %v93
      %v112 = vsel %vm110, %v75, %v95
      %vm113 = vcmask 523264
      %v114 = vsel %vm113, %v111, %v99
      %v115 = vsel %vm113, %v112, %v101
      %vm116 = vcmask 785408
      %v117 = vsel %vm116, %v114, %v105
      %v118 = vsel %vm116, %v115, %v107
      %v119 = vld [vmem:[#allocation6] sm:$0x7]
      %v121 = vlaneseq
      %v122 = vshrl.u32 %v121, 7
      %v123 = vsub.s32 0, %v122
      %v124 = vrot.slane %v119, %v123
      %v125 = vlaneseq
      %v126 = vshrl.u32 %v125, 7
      %v127 = vsub.s32 1, %v126
      %v128 = vrot.slane %v119, %v127
      %v129 = vlaneseq
      %v130 = vshrl.u32 %v129, 7
      %v131 = vsub.s32 2, %v130
      %v132 = vrot.slane %v119, %v131
      %v136 = vsub.f32 %v117, %v124
      %v137 = vsub.f32 %v117, %v128
      %v138 = vsub.f32 %v117, %v132
      %v139 = vsub.f32 %v118, %v124
      %v140 = vsub.f32 %v118, %v128
      %v141 = vsub.f32 %v118, %v132
      %142 = vrot.lane.b32.xlu0 %v136, 96
      %v143 = vpop.permute.xlu0 %142
      %144 = vrot.lane.b32.xlu0 %v139, 96
      %v145 = vpop.permute.xlu0 %144
      %146 = vrot.lane.b32.xlu0 %v137, 96
      %v147 = vpop.permute.xlu0 %146
      %148 = vrot.lane.b32.xlu0 %v140, 96
      %v149 = vpop.permute.xlu0 %148
      %150 = vrot.lane.b32.xlu0 %v138, 96
      %v151 = vpop.permute.xlu0 %150
      %152 = vrot.lane.b32.xlu0 %v141, 96
      %v153 = vpop.permute.xlu0 %152
      %v154 = vlaneseq
      %v155 = vand.u32 %v154, 127
      %vm156 = vcmp.lt.s32.totalorder %v155, 96
      %v157 = vsel %vm156, %v147, %v151
      %v158 = vsel %vm156, %v149, %v153
      %v159 = vsel %vm156, %v143, %v147
      %v160 = vsel %vm156, %v145, %v149
      %v161 = vsel %vm156, %v151, %v143
      %v162 = vsel %vm156, %v153, %v145
      %vm163 = vcmp.ge.f32.partialorder %v136, 0.0
      %vm164 = vcmp.ge.f32.partialorder %v137, 0.0
      %vm165 = vcmp.ge.f32.partialorder %v138, 0.0
      %vm166 = vcmp.ge.f32.partialorder %v139, 0.0
      %vm167 = vcmp.ge.f32.partialorder %v140, 0.0
      %vm168 = vcmp.ge.f32.partialorder %v141, 0.0
      %vm169 = vcmp.lt.f32.partialorder %v159, 0.0
      %vm170 = vcmp.lt.f32.partialorder %v157, 0.0
      %vm171 = vcmp.lt.f32.partialorder %v161, 0.0
      %vm172 = vcmp.lt.f32.partialorder %v160, 0.0
      %vm173 = vcmp.lt.f32.partialorder %v158, 0.0
      %vm174 = vcmp.lt.f32.partialorder %v162, 0.0
      %vm175 = vmand %vm163, %vm169
      %vm176 = vmand %vm164, %vm170
      %vm177 = vmand %vm165, %vm171
      %vm178 = vmand %vm166, %vm172
      %vm179 = vmand %vm167, %vm173
      %vm180 = vmand %vm168, %vm174
      %v181 = vsel %vm175, 1.0, 0.0
      %v182 = vsel %vm176, 1.0, 0.0
      %v183 = vsel %vm177, 1.0, 0.0
      %v184 = vsel %vm178, 1.0, 0.0
      %v185 = vsel %vm179, 1.0, 0.0
      %v186 = vsel %vm180, 1.0, 0.0
      %v187 = vld [vmem:[#allocation8] ss:$8 sm:$0x7]
      %s188 = scalar_lea.vmem [#allocation8], 3
      %v189 = vld [vmem:[%s188] ss:$8 sm:$0x7]
      %190 = vrot.lane.b32.xlu0 %v136, 64
      %v191 = vpop.permute.xlu0 %190
      %192 = vrot.lane.b32.xlu0 %v139, 64
      %v193 = vpop.permute.xlu0 %192
      %194 = vrot.lane.b32.xlu0 %v137, 64
      %v195 = vpop.permute.xlu0 %194
      %196 = vrot.lane.b32.xlu0 %v140, 64
      %v197 = vpop.permute.xlu0 %196
      %198 = vrot.lane.b32.xlu0 %v138, 64
      %v199 = vpop.permute.xlu0 %198
      %200 = vrot.lane.b32.xlu0 %v141, 64
      %v201 = vpop.permute.xlu0 %200
      %vm202 = vcmp.lt.s32.totalorder %v155, 64
      %v203 = vsel %vm202, %v195, %v199
      %v204 = vsel %vm202, %v197, %v201
      %v205 = vsel %vm202, %v191, %v195
      %v206 = vsel %vm202, %v193, %v197
      %v207 = vsel %vm202, %v199, %v191
      %v208 = vsel %vm202, %v201, %v193
      %209 = vrot.lane.b32.xlu0 %v181, 96
      %v210 = vpop.permute.xlu0 %209
      %211 = vrot.lane.b32.xlu0 %v184, 96
      %v212 = vpop.permute.xlu0 %211
      %213 = vrot.lane.b32.xlu0 %v182, 96
      %v214 = vpop.permute.xlu0 %213
      %215 = vrot.lane.b32.xlu0 %v185, 96
      %v216 = vpop.permute.xlu0 %215
      %217 = vrot.lane.b32.xlu0 %v183, 96
      %v218 = vpop.permute.xlu0 %217
      %219 = vrot.lane.b32.xlu0 %v186, 96
      %v220 = vpop.permute.xlu0 %219
      %v221 = vsel %vm156, %v214, %v218
      %v222 = vsel %vm156, %v216, %v220
      %v223 = vsel %vm156, %v210, %v214
      %v224 = vsel %vm156, %v212, %v216
      %v225 = vsel %vm156, %v218, %v210
      %v226 = vsel %vm156, %v220, %v212
      %v228 = vlaneseq
      %v229 = vshrl.u32 %v228, 7
      %v230 = vsub.s32 0, %v229
      %v231 = vrot.slane %v187, %v230
      %v232 = vlaneseq
      %v233 = vshrl.u32 %v232, 7
      %v234 = vsub.s32 1, %v233
      %v235 = vrot.slane %v187, %v234
      %v236 = vlaneseq
      %v237 = vshrl.u32 %v236, 7
      %v238 = vsub.s32 2, %v237
      %v239 = vrot.slane %v187, %v238
      %v243 = vmul.f32 %v136, %v231
      %v244 = vmul.f32 %v137, %v235
      %v245 = vmul.f32 %v138, %v239
      %v246 = vmul.f32 %v139, %v231
      %v247 = vmul.f32 %v140, %v235
      %v248 = vmul.f32 %v141, %v239
      %v249 = vmul.f32 %v243, %v181
      %v250 = vmul.f32 %v244, %v182
      %v251 = vmul.f32 %v245, %v183
      %v252 = vmul.f32 %v246, %v184
      %v253 = vmul.f32 %v247, %v185
      %v254 = vmul.f32 %v248, %v186
      %v256 = vlaneseq
      %v257 = vshrl.u32 %v256, 7
      %v258 = vsub.s32 0, %v257
      %v259 = vrot.slane %v189, %v258
      %v260 = vlaneseq
      %v261 = vshrl.u32 %v260, 7
      %v262 = vsub.s32 1, %v261
      %v263 = vrot.slane %v189, %v262
      %v264 = vlaneseq
      %v265 = vshrl.u32 %v264, 7
      %v266 = vsub.s32 2, %v265
      %v267 = vrot.slane %v189, %v266
      %v271 = vmul.f32 %v205, %v259
      %v272 = vmul.f32 %v203, %v263
      %v273 = vmul.f32 %v207, %v267
      %v274 = vmul.f32 %v206, %v259
      %v275 = vmul.f32 %v204, %v263
      %v276 = vmul.f32 %v208, %v267
      %v277 = vmul.f32 %v271, %v223
      %v278 = vmul.f32 %v272, %v221
      %v279 = vmul.f32 %v273, %v225
      %v280 = vmul.f32 %v274, %v224
      %v281 = vmul.f32 %v275, %v222
      %v282 = vmul.f32 %v276, %v226
      %v283 = vadd.f32 %v249, %v277
      %v284 = vadd.f32 %v250, %v278
      %v285 = vadd.f32 %v251, %v279
      %v286 = vadd.f32 %v252, %v280
      %v287 = vadd.f32 %v253, %v281
      %v288 = vadd.f32 %v254, %v282
      %s289 = scalar_lea.vmem [#allocation8], 1
      %v290 = vld [vmem:[%s289] ss:$8 sm:$0x7]
      %s291 = scalar_lea.vmem [#allocation8], 4
      %v292 = vld [vmem:[%s291] ss:$8 sm:$0x7]
      %293 = vrot.lane.b32.xlu0 %v136, 32
      %v294 = vpop.permute.xlu0 %293
      %295 = vrot.lane.b32.xlu0 %v139, 32
      %v296 = vpop.permute.xlu0 %295
      %297 = vrot.lane.b32.xlu0 %v137, 32
      %v298 = vpop.permute.xlu0 %297
      %299 = vrot.lane.b32.xlu0 %v140, 32
      %v300 = vpop.permute.xlu0 %299
      %301 = vrot.lane.b32.xlu0 %v138, 32
      %v302 = vpop.permute.xlu0 %301
      %303 = vrot.lane.b32.xlu0 %v141, 32
      %v304 = vpop.permute.xlu0 %303
      %vm305 = vcmp.lt.s32.totalorder %v155, 32
      %v306 = vsel %vm305, %v298, %v302
      %v307 = vsel %vm305, %v300, %v304
      %v308 = vsel %vm305, %v294, %v298
      %v309 = vsel %vm305, %v296, %v300
      %v310 = vsel %vm305, %v302, %v294
      %v311 = vsel %vm305, %v304, %v296
      %312 = vrot.lane.b32.xlu0 %v283, 96
      %v313 = vpop.permute.xlu0 %312
      %314 = vrot.lane.b32.xlu0 %v286, 96
      %v315 = vpop.permute.xlu0 %314
      %316 = vrot.lane.b32.xlu0 %v284, 96
      %v317 = vpop.permute.xlu0 %316
      %318 = vrot.lane.b32.xlu0 %v287, 96
      %v319 = vpop.permute.xlu0 %318
      %320 = vrot.lane.b32.xlu0 %v285, 96
      %v321 = vpop.permute.xlu0 %320
      %322 = vrot.lane.b32.xlu0 %v288, 96
      %v323 = vpop.permute.xlu0 %322
      %v324 = vsel %vm156, %v317, %v321
      %v325 = vsel %vm156, %v319, %v323
      %v326 = vsel %vm156, %v313, %v317
      %v327 = vsel %vm156, %v315, %v319
      %v328 = vsel %vm156, %v321, %v313
      %v329 = vsel %vm156, %v323, %v315
      %v331 = vlaneseq
      %v332 = vshrl.u32 %v331, 7
      %v333 = vsub.s32 0, %v332
      %v334 = vrot.slane %v290, %v333
      %v335 = vlaneseq
      %v336 = vshrl.u32 %v335, 7
      %v337 = vsub.s32 1, %v336
      %v338 = vrot.slane %v290, %v337
      %v339 = vlaneseq
      %v340 = vshrl.u32 %v339, 7
      %v341 = vsub.s32 2, %v340
      %v342 = vrot.slane %v290, %v341
      %v346 = vmul.f32 %v136, %v334
      %v347 = vmul.f32 %v137, %v338
      %v348 = vmul.f32 %v138, %v342
      %v349 = vmul.f32 %v139, %v334
      %v350 = vmul.f32 %v140, %v338
      %v351 = vmul.f32 %v141, %v342
      %v352 = vmul.f32 %v346, %v283
      %v353 = vmul.f32 %v347, %v284
      %v354 = vmul.f32 %v348, %v285
      %v355 = vmul.f32 %v349, %v286
      %v356 = vmul.f32 %v350, %v287
      %v357 = vmul.f32 %v351, %v288
      %v359 = vlaneseq
      %v360 = vshrl.u32 %v359, 7
      %v361 = vsub.s32 0, %v360
      %v362 = vrot.slane %v292, %v361
      %v363 = vlaneseq
      %v364 = vshrl.u32 %v363, 7
      %v365 = vsub.s32 1, %v364
      %v366 = vrot.slane %v292, %v365
      %v367 = vlaneseq
      %v368 = vshrl.u32 %v367, 7
      %v369 = vsub.s32 2, %v368
      %v370 = vrot.slane %v292, %v369
      %v374 = vmul.f32 %v308, %v362
      %v375 = vmul.f32 %v306, %v366
      %v376 = vmul.f32 %v310, %v370
      %v377 = vmul.f32 %v309, %v362
      %v378 = vmul.f32 %v307, %v366
      %v379 = vmul.f32 %v311, %v370
      %v380 = vmul.f32 %v374, %v326
      %v381 = vmul.f32 %v375, %v324
      %v382 = vmul.f32 %v376, %v328
      %v383 = vmul.f32 %v377, %v327
      %v384 = vmul.f32 %v378, %v325
      %v385 = vmul.f32 %v379, %v329
      %v386 = vadd.f32 %v352, %v380
      %v387 = vadd.f32 %v353, %v381
      %v388 = vadd.f32 %v354, %v382
      %v389 = vadd.f32 %v355, %v383
      %v390 = vadd.f32 %v356, %v384
      %v391 = vadd.f32 %v357, %v385
      %s392 = scalar_lea.vmem [#allocation8], 2
      %v393 = vld [vmem:[%s392] ss:$8 sm:$0x7]
      %s394 = scalar_lea.vmem [#allocation8], 5
      %v395 = vld [vmem:[%s394] ss:$8 sm:$0x7]
      %396 = vrot.lane.b32.xlu0 %v386, 96
      %v397 = vpop.permute.xlu0 %396
      %398 = vrot.lane.b32.xlu0 %v389, 96
      %v399 = vpop.permute.xlu0 %398
      %400 = vrot.lane.b32.xlu0 %v387, 96
      %v401 = vpop.permute.xlu0 %400
      %402 = vrot.lane.b32.xlu0 %v390, 96
      %v403 = vpop.permute.xlu0 %402
      %404 = vrot.lane.b32.xlu0 %v388, 96
      %v405 = vpop.permute.xlu0 %404
      %406 = vrot.lane.b32.xlu0 %v391, 96
      %v407 = vpop.permute.xlu0 %406
      %v408 = vsel %vm156, %v401, %v405
      %v409 = vsel %vm156, %v403, %v407
      %v410 = vsel %vm156, %v397, %v401
      %v411 = vsel %vm156, %v399, %v403
      %v413 = vlaneseq
      %v414 = vshrl.u32 %v413, 7
      %v415 = vsub.s32 0, %v414
      %v416 = vrot.slane %v393, %v415
      %v417 = vlaneseq
      %v418 = vshrl.u32 %v417, 7
      %v419 = vsub.s32 1, %v418
      %v420 = vrot.slane %v393, %v419
      %v423 = vmul.f32 %v136, %v416
      %v424 = vmul.f32 %v137, %v420
      %v425 = vmul.f32 %v139, %v416
      %v426 = vmul.f32 %v140, %v420
      %v427 = vmul.f32 %v423, %v386
      %v428 = vmul.f32 %v424, %v387
      %v429 = vmul.f32 %v425, %v389
      %v430 = vmul.f32 %v426, %v390
      %v432 = vlaneseq
      %v433 = vshrl.u32 %v432, 7
      %v434 = vsub.s32 0, %v433
      %v435 = vrot.slane %v395, %v434
      %v436 = vlaneseq
      %v437 = vshrl.u32 %v436, 7
      %v438 = vsub.s32 1, %v437
      %v439 = vrot.slane %v395, %v438
      %v442 = vmul.f32 %v137, %v435
      %v443 = vmul.f32 %v138, %v439
      %v444 = vmul.f32 %v140, %v435
      %v445 = vmul.f32 %v141, %v439
      %v446 = vmul.f32 %v442, %v410
      %v447 = vmul.f32 %v443, %v408
      %v448 = vmul.f32 %v444, %v411
      %v449 = vmul.f32 %v445, %v409
      %v450 = vadd.f32 %v427, %v446
      %v451 = vadd.f32 %v428, %v447
      %v452 = vadd.f32 %v429, %v448
      %v453 = vadd.f32 %v430, %v449
      %v454 = vpack.c.bf16 %v452, %v450
      %v455 = vpack.c.bf16 %v453, %v451
      %v458 = vunpack.c.l.b16 %v454
      %v459 = vunpack.c.l.b16 %v455
      %v460 = vunpack.c.h.b16 %v454
      %v461 = vunpack.c.h.b16 %v455
      %v462 = vpack.c.b16 %v459, %v458
      %v463 = vpack.c.b16 %v461, %v460
      %466 = vst [vmem:[#allocation2] sm:$0xff] %v462
      %467 = vst [vmem:[#allocation2 + $0xc] sm:$0xff] %v463
      %v468 = vpack.c.bf16 %v89, %v88
      %v470 = vunpack.c.l.b16 %v468
      %v471 = vunpack.c.h.b16 %v468
      %v472 = vpack.c.b16 %v470, %v470
      %v473 = vpack.c.b16 %v471, %v471
      %vm476 = vcmask 257024
      %477 = vst.msk [vmem:[#allocation2 + $0x8] sm:$0xf] %vm476, %v472
      %478 = vst.msk [vmem:[#allocation2 + $0x14] sm:$0xf] %vm476, %v473
      %vm479 = vcmask 1043712
      %480 = vst.msk [vmem:[#allocation2 + $0x8] sm:$0xf] %vm479, 0
      %481 = vst.msk [vmem:[#allocation2 + $0x14] sm:$0xf] %vm479, 0
    $region37: #{tpu_custom_call.1} parent=1 // pred_fallthru
      _
    %v482 = vld [vmem:[#allocation2] sm:$0xff]
    %v483 = vld [vmem:[#allocation2 + $0x8] sm:$0xf]
    %v484 = vld [vmem:[#allocation2 + $0xc] sm:$0xff]
    %v485 = vld [vmem:[#allocation2 + $0x14] sm:$0xf]
    %v486 = vld [vmem:[#allocation9] sm:$0xf]
    %v487 = vld [vmem:[#allocation9 + $0x4] sm:$0xf]
    %v488 = vld [vmem:[#allocation9 + $0x8] sm:$0xf]
    %v489 = vld [vmem:[#allocation9 + $0xc] sm:$0xf]
    %v490 = vld [vmem:[#allocation9 + $0x10] sm:$0xf]
    %v491 = vld [vmem:[#allocation9 + $0x14] sm:$0xf]
    %v492 = vld [vmem:[#allocation9 + $0x18] sm:$0xf]
    %v493 = vld [vmem:[#allocation9 + $0x1c] sm:$0xf]
    %v494 = vld [vmem:[#allocation9 + $0x20] sm:$0xf]
    %v495 = vld [vmem:[#allocation9 + $0x24] sm:$0xf]
    %v496 = vld [vmem:[#allocation9 + $0x28] sm:$0xf]
    %v497 = vld [vmem:[#allocation9 + $0x2c] sm:$0xf]
    %v498 = vld [vmem:[#allocation9 + $0x30] sm:$0xf]
    %v499 = vld [vmem:[#allocation9 + $0x34] sm:$0xf]
    %v500 = vld [vmem:[#allocation9 + $0x38] sm:$0xf]
    %v501 = vld [vmem:[#allocation9 + $0x3c] sm:$0xf]
    %v502 = vld [vmem:[#allocation9 + $0x40] sm:$0xf]
    %v503 = vld [vmem:[#allocation9 + $0x44] sm:$0xf]
    %v504 = vld [vmem:[#allocation9 + $0x48] sm:$0xf]
    %v505 = vld [vmem:[#allocation9 + $0x4c] sm:$0xf]
    %v506 = vld [vmem:[#allocation9 + $0x50] sm:$0xf]
    %v507 = vld [vmem:[#allocation9 + $0x54] sm:$0xf]
    %v508 = vld [vmem:[#allocation9 + $0x58] sm:$0xf]
    %v509 = vld [vmem:[#allocation9 + $0x5c] sm:$0xf]
    %v510 = vld [vmem:[#allocation9 + $0x60] sm:$0xf]
    %v511 = vld [vmem:[#allocation9 + $0x64] sm:$0xf]
    %v512 = vld [vmem:[#allocation9 + $0x68] sm:$0xf]
    %v513 = vld [vmem:[#allocation9 + $0x6c] sm:$0xf]
    %v514 = vld [vmem:[#allocation9 + $0x70] sm:$0xf]
    %v515 = vld [vmem:[#allocation9 + $0x74] sm:$0xf]
    %v516 = vld [vmem:[#allocation9 + $0x78] sm:$0xf]
    %v517 = vld [vmem:[#allocation9 + $0x7c] sm:$0xf]
    %v518 = vld [vmem:[#allocation9 + $0x80] sm:$0xf]
    %v519 = vld [vmem:[#allocation9 + $0x84] sm:$0xf]
    %v520 = vld [vmem:[#allocation9 + $0x88] sm:$0xf]
    %v521 = vld [vmem:[#allocation9 + $0x8c] sm:$0xf]
    %v522 = vld [vmem:[#allocation9 + $0x90] sm:$0xf]
    %v523 = vld [vmem:[#allocation9 + $0x94] sm:$0xf]
    %v524 = vld [vmem:[#allocation9 + $0x98] sm:$0xf]
    %v525 = vld [vmem:[#allocation9 + $0x9c] sm:$0xf]
    %v526 = vld [vmem:[#allocation9 + $0xa0] sm:$0xf]
    %v527 = vld [vmem:[#allocation9 + $0xa4] sm:$0xf]
    %v528 = vld [vmem:[#allocation9 + $0xa8] sm:$0xf]
    %v529 = vld [vmem:[#allocation9 + $0xac] sm:$0xf]
    %v530 = vld [vmem:[#allocation9 + $0xb0] sm:$0xf]
    %v531 = vld [vmem:[#allocation9 + $0xb4] sm:$0xf]
    %v532 = vld [vmem:[#allocation9 + $0xb8] sm:$0xf]
    %v533 = vld [vmem:[#allocation9 + $0xbc] sm:$0xf]
    %v538 = vunpack.c.l.b16 %v482
    %v539 = vunpack.c.h.b16 %v482
    %v540 = vunpack.c.l.b16 %v483
    %v541 = vunpack.c.l.b16 %v484
    %v542 = vunpack.c.h.b16 %v484
    %v543 = vunpack.c.l.b16 %v485
    %v544 = vpack.c.b16 %v541, %v538
    %v545 = vpack.c.b16 %v542, %v539
    %v546 = vpack.c.b16 %v543, %v540
    %v598 = vunpack.c.l.b16 %v486
    %v599 = vunpack.c.l.b16 %v487
    %v600 = vunpack.c.l.b16 %v488
    %v601 = vunpack.c.l.b16 %v489
    %v602 = vunpack.c.l.b16 %v490
    %v603 = vunpack.c.l.b16 %v491
    %v604 = vunpack.c.l.b16 %v492
    %v605 = vunpack.c.l.b16 %v493
    %v606 = vunpack.c.l.b16 %v494
    %v607 = vunpack.c.l.b16 %v495
    %v608 = vunpack.c.l.b16 %v496
    %v609 = vunpack.c.l.b16 %v497
    %v610 = vunpack.c.l.b16 %v498
    %v611 = vunpack.c.l.b16 %v499
    %v612 = vunpack.c.l.b16 %v500
    %v613 = vunpack.c.l.b16 %v501
    %v614 = vunpack.c.l.b16 %v502
    %v615 = vunpack.c.l.b16 %v503
    %v616 = vunpack.c.l.b16 %v504
    %v617 = vunpack.c.l.b16 %v505
    %v618 = vunpack.c.l.b16 %v506
    %v619 = vunpack.c.l.b16 %v507
    %v620 = vunpack.c.l.b16 %v508
    %v621 = vunpack.c.l.b16 %v509
    %v622 = vunpack.c.l.b16 %v510
    %v623 = vunpack.c.l.b16 %v511
    %v624 = vunpack.c.l.b16 %v512
    %v625 = vunpack.c.l.b16 %v513
    %v626 = vunpack.c.l.b16 %v514
    %v627 = vunpack.c.l.b16 %v515
    %v628 = vunpack.c.l.b16 %v516
    %v629 = vunpack.c.l.b16 %v517
    %v630 = vunpack.c.l.b16 %v518
    %v631 = vunpack.c.l.b16 %v519
    %v632 = vunpack.c.l.b16 %v520
    %v633 = vunpack.c.l.b16 %v521
    %v634 = vunpack.c.l.b16 %v522
    %v635 = vunpack.c.l.b16 %v523
    %v636 = vunpack.c.l.b16 %v524
    %v637 = vunpack.c.l.b16 %v525
    %v638 = vunpack.c.l.b16 %v526
    %v639 = vunpack.c.l.b16 %v527
    %v640 = vunpack.c.l.b16 %v528
    %v641 = vunpack.c.l.b16 %v529
    %v642 = vunpack.c.l.b16 %v530
    %v643 = vunpack.c.l.b16 %v531
    %v644 = vunpack.c.l.b16 %v532
    %v645 = vunpack.c.l.b16 %v533
    %v646 = vpack.c.b16 %v599, %v598
    %v647 = vpack.c.b16 %v601, %v600
    %v648 = vpack.c.b16 %v603, %v602
    %v649 = vpack.c.b16 %v605, %v604
    %v650 = vpack.c.b16 %v607, %v606
    %v651 = vpack.c.b16 %v609, %v608
    %v652 = vpack.c.b16 %v611, %v610
    %v653 = vpack.c.b16 %v613, %v612
    %v654 = vpack.c.b16 %v615, %v614
    %v655 = vpack.c.b16 %v617, %v616
    %v656 = vpack.c.b16 %v619, %v618
    %v657 = vpack.c.b16 %v621, %v620
    %v658 = vpack.c.b16 %v623, %v622
    %v659 = vpack.c.b16 %v625, %v624
    %v660 = vpack.c.b16 %v627, %v626
    %v661 = vpack.c.b16 %v629, %v628
    %v662 = vpack.c.b16 %v631, %v630
    %v663 = vpack.c.b16 %v633, %v632
    %v664 = vpack.c.b16 %v635, %v634
    %v665 = vpack.c.b16 %v637, %v636
    %v666 = vpack.c.b16 %v639, %v638
    %v667 = vpack.c.b16 %v641, %v640
    %v668 = vpack.c.b16 %v643, %v642
    %v669 = vpack.c.b16 %v645, %v644
    %694 = vmatprep.subr.bf16.mxu0 0
    %695 = vmatpush1.bf16.msra.mxu0 %v653
    %696 = vmatprep.subr.bf16.mxu0 0
    %697 = vmatpush1.bf16.msra.mxu0 %v652
    %698 = vmatprep.subr.bf16.mxu0 0
    %699 = vmatpush1.bf16.msra.mxu0 %v651
    %700 = vmatprep.subr.bf16.mxu0 0
    %701 = vmatpush1.bf16.msra.mxu0 %v650
    %702 = vmatprep.subr.bf16.mxu0 0
    %703 = vmatpush1.bf16.msra.mxu0 %v649
    %704 = vmatprep.subr.bf16.mxu0 0
    %705 = vmatpush1.bf16.msra.mxu0 %v648
    %706 = vmatprep.subr.bf16.mxu0 0
    %707 = vmatpush1.bf16.msra.mxu0 %v647
    %708 = vmatprep.subr.bf16.mxu0 0
    %709 = vmatpush1.bf16.msra.mxu0 %v646
    %710 = vmatprep.subr.bf16.mxu0 0
    %711 = vmatpush2.bf16.msra.mxu0 %v661
    %712 = vmatprep.subr.bf16.mxu0 0
    %713 = vmatpush2.bf16.msra.mxu0 %v660
    %714 = vmatprep.subr.bf16.mxu0 0
    %715 = vmatpush2.bf16.msra.mxu0 %v659
    %716 = vmatprep.subr.bf16.mxu0 0
    %717 = vmatpush2.bf16.msra.mxu0 %v658
    %718 = vmatprep.subr.bf16.mxu0 0
    %719 = vmatpush2.bf16.msra.mxu0 %v657
    %720 = vmatprep.subr.bf16.mxu0 0
    %721 = vmatpush2.bf16.msra.mxu0 %v656
    %722 = vmatprep.subr.bf16.mxu0 0
    %723 = vmatpush2.bf16.msra.mxu0 %v655
    %724 = vmatprep.subr.bf16.mxu0 0
    %725 = vmatpush2.bf16.msra.mxu0 %v654
    %726 = vmatprep.mubr.bf16.mxu0 %v545
    %727 = vmatmul.mubr.bf16.gmra.mxu0 %v544
    %v728 = vpop.f32.mrf.mxu0
    %v729 = vadd.f32 0.0, %v728
    %v730 = vpop.f32.mrf.mxu0
    %v731 = vpop.f32.mrf.mxu0
    %v732 = vadd.f32 0.0, %v731
    %v733 = vpop.f32.mrf.mxu0
    %734 = vdwg.mxu0
    %735 = vmatprep.subr.bf16.mxu0 0
    %736 = vmatpush1.bf16.msra.mxu0 %v669
    %737 = vmatprep.subr.bf16.mxu0 0
    %738 = vmatpush1.bf16.msra.mxu0 %v668
    %739 = vmatprep.subr.bf16.mxu0 0
    %740 = vmatpush1.bf16.msra.mxu0 %v667
    %741 = vmatprep.subr.bf16.mxu0 0
    %742 = vmatpush1.bf16.msra.mxu0 %v666
    %743 = vmatprep.subr.bf16.mxu0 0
    %744 = vmatpush1.bf16.msra.mxu0 %v665
    %745 = vmatprep.subr.bf16.mxu0 0
    %746 = vmatpush1.bf16.msra.mxu0 %v664
    %747 = vmatprep.subr.bf16.mxu0 0
    %748 = vmatpush1.bf16.msra.mxu0 %v663
    %749 = vmatprep.subr.bf16.mxu0 0
    %750 = vmatpush1.bf16.msra.mxu0 %v662
    %751 = vmatprep.subr.bf16.mxu0 0
    %752 = vmatpush2.bf16.msra.mxu0 0
    %753 = vmatprep.subr.bf16.mxu0 0
    %754 = vmatpush2.bf16.msra.mxu0 0
    %755 = vmatprep.subr.bf16.mxu0 0
    %756 = vmatpush2.bf16.msra.mxu0 0
    %757 = vmatprep.subr.bf16.mxu0 0
    %758 = vmatpush2.bf16.msra.mxu0 0
    %759 = vmatprep.subr.bf16.mxu0 0
    %760 = vmatpush2.bf16.msra.mxu0 0
    %761 = vmatprep.subr.bf16.mxu0 0
    %762 = vmatpush2.bf16.msra.mxu0 0
    %763 = vmatprep.subr.bf16.mxu0 0
    %764 = vmatpush2.bf16.msra.mxu0 0
    %765 = vmatprep.subr.bf16.mxu0 0
    %766 = vmatpush2.bf16.msra.mxu0 0
    %767 = vmatprep.mubr.bf16.mxu0 0
    %768 = vmatmul.mubr.bf16.gmra.mxu0 %v546
    %v769 = vpop.f32.mrf.mxu0
    %v770 = vadd.f32 %v729, %v769
    %v771 = vpop.f32.mrf.mxu0
    %v772 = vpop.f32.mrf.mxu0
    %v773 = vadd.f32 %v732, %v772
    %v774 = vpop.f32.mrf.mxu0
    %775 = vdwg.mxu0
    %776 = vst [vmem:[#allocation11] sm:$0xff] %v770
    %777 = vst [vmem:[#allocation11 + $0x8] sm:$0xff] %v773
    // Predicated region
    $region38: #{tpu_custom_call.1} parent=1 // pred_check
      _
    $region39: #{tpu_custom_call.1} parent=1 // pred_check_branch
      %779 = sbr.rel (0) target = $region41
    $region40: #{tpu_custom_call.1} parent=1 // pred_region
      %s781 = ssub.s32 256, 256
      %782 = vsyncadd [#allocation5], %s781
      %s783 = sshll.u32 [#allocation11], 4
      %s784 = int_to_ptr.vmem [resolvable:$true] %s783
      %789 = dma.vmem_to_hbm [thread:$0]  %s784, 256, %s4, [#allocation5], 128, 128, 8
    $region41: #{tpu_custom_call.1} parent=1 // pred_fallthru
      _
    // Predicated region
    $region42: #{tpu_custom_call.1} parent=1 // pred_check
      _
    $region43: #{tpu_custom_call.1} parent=1 // pred_check_branch
      %791 = sbr.rel (0) target = $region45
    $region44: #{tpu_custom_call.1} parent=1 // pred_region
      %792 = dma.done [#allocation5], 256
    $region45: #{tpu_custom_call.1} parent=1 // pred_fallthru
      _
    %793 = vsyncpa [#allocation4], 1
    %794 = vsyncpa [#allocation7], 1
    %795 = vsyncpa [#allocation10], 1
    %796 = vsyncpa [#allocation5], 1

</llo_original>
